<compile_context>
chip_gen: v7x
topology: tpu7x:2x2x1
jax: 0.10.0
libtpu: 0.0.40
codegen_flags: <defaults>
</compile_context>

<pallas_src>
import numpy as np
import jax
import jax.numpy as jnp
from jax import lax
from jax.experimental import pallas as pl
from jax.experimental.pallas import tpu as pltpu


# ----------------------------------------------------------------------------- helpers
def _pointwise_loss(diff, p):
    """Elementwise part of L1 (p=1), MSE (p=2), SmoothL1/beta=1 (p=3)."""
    if p == 1:
        return jnp.abs(diff)
    if p == 2:
        return diff * diff
    if p == 3:
        ad = jnp.abs(diff)
        return jnp.where(ad < 1.0, 0.5 * diff * diff, ad - 0.5)
    raise ValueError("p must be 1, 2 or 3")


def _spectral_laplace_matrix(s, D):
    """Real circulant D2 with  irfft2(sym * fft2(u)) == D2 @ u + u @ D2,
    sym(kx,ky) = -4 (pi/D)^2 (kx^2 + ky^2).  Built on host in float64 (exact
    phases; 1/s normalisation folded in)."""
    k_max = s // 2
    k = np.concatenate([np.arange(0, k_max + 1), np.arange(-k_max + 1, 0)]).astype(np.float64)
    lam = -4.0 * (np.pi / D) ** 2 * k ** 2                  # 1-D spectral symbol
    col = np.real(np.fft.ifft(lam))                         # first column of the circulant
    idx = (np.arange(s)[:, None] - np.arange(s)[None, :]) % s
    return col[idx]                                         # (s, s), symmetric


def _choose_block_batch(batch, s, bytes_per_elem=2, target_bytes=(3 << 20) // 2, max_tb=32):
    """Images packed per grid step.  Aim for ~1-2 MB per input block (near the HBM
    roofline, amortises the ~0.35 us per-grid-step overhead) but keep >= 4 grid
    steps when the batch allows it so dimension_semantics=('parallel',) can shard
    the batch axis across v7x's 2 TensorCores while still pipelining DMA/compute.
    NOTE: prime/odd batch sizes silently fall back to small tb (correct, slower)."""
    target_tb = max(1, min(max_tb, target_bytes // (bytes_per_elem * s * s)))
    divisors = [d for d in range(1, batch + 1) if batch % d == 0]
    tb = max([d for d in divisors if d <= target_tb] or [1])
    if batch // tb < 4:
        candidates = [d for d in divisors if batch // d >= 4]
        if candidates:
            tb = max(candidates)
    return tb


# ----------------------------------------------------------------------------- kernels
def _residual_image(ub, af, d2hi, d2lo, omega_sq):
    """Helmholtz residual for one (s, s) image: D2 @ u + u @ D2 + omega^2 a^2 u (f32).
    ub is bf16; D2 is a hi/lo bf16 pair; accumulation and elementwise math in f32."""
    lap = (jnp.dot(d2hi, ub, preferred_element_type=jnp.float32)
           + jnp.dot(d2lo, ub, preferred_element_type=jnp.float32)
           + jnp.dot(ub, d2hi, preferred_element_type=jnp.float32)
           + jnp.dot(ub, d2lo, preferred_element_type=jnp.float32))
    uf = ub.astype(jnp.float32)
    return lap + (omega_sq * (af * af)) * uf


def _make_loss_kernel(tb, s, orig, omega_sq, p):
    """Fused kernel: per grid step, sum_{b<tb} Lp(residual_b[crop]) reduced over rows,
    written as a (1, 1, s) partial that is summed/normalised in glue."""
    unroll = tb if tb <= 8 else 4

    def kernel(u_ref, a_ref, d2hi_ref, d2lo_ref, out_ref):
        d2hi = d2hi_ref[...]
        d2lo = d2lo_ref[...]
        if orig < s:                                        # static pad crop mask
            rows = lax.broadcasted_iota(jnp.int32, (s, s), 0)
            cols = lax.broadcasted_iota(jnp.int32, (s, s), 1)
            keep = jnp.logical_and(rows < orig, cols < orig)

        def body(b, acc):
            ub = u_ref[b]                                   # (s, s) bf16, dynamic index
            af = a_ref[b].astype(jnp.float32)
            res = _residual_image(ub, af, d2hi, d2lo, omega_sq)
            if orig < s:
                res = jnp.where(keep, res, 0.0)             # Lp(0) == 0 for p in {1,2,3}
            return acc + _pointwise_loss(res, p)

        acc = lax.fori_loop(0, tb, body, jnp.zeros((s, s), jnp.float32), unroll=unroll)
        out_ref[...] = jnp.sum(acc, axis=0, keepdims=True).reshape(1, 1, s)

    return kernel


def _make_residual_kernel(tb, s, omega_sq):
    """Debug kernel: full residual field written per image (no stacks/transposes)."""
    unroll = tb if tb <= 8 else 4

    def kernel(u_ref, a_ref, d2hi_ref, d2lo_ref, res_ref):
        d2hi = d2hi_ref[...]
        d2lo = d2lo_ref[...]

        def body(b, carry):
            ub = u_ref[b]
            af = a_ref[b].astype(jnp.float32)
            res_ref[b] = _residual_image(ub, af, d2hi, d2lo, omega_sq).astype(res_ref.dtype)
            return carry

        lax.fori_loop(0, tb, body, 0, unroll=unroll)

    return kernel


# ----------------------------------------------------------------------------- module
class HelmholtzLoss:
    """JAX/Pallas port of the PyTorch Helmholtz_loss module."""

    def __init__(self, omega=5.0 * np.pi / 2.0, p=1, D=1.0, pad_factor=0, in_size=128,
                 block_batch=None):
        if p not in (1, 2, 3):
            raise ValueError("p must be 1, 2 or 3")
        if in_size % 8 != 0:
            raise NotImplementedError("Pallas kernel assumes grid size is a multiple of 8 "
                                      "(TPU sublane tile)")
        self.omega = float(omega)
        self.p = int(p)
        self.pad_factor = int(pad_factor)
        self.in_size = int(in_size)
        self.original = self.in_size - self.pad_factor
        self.D = float(D) + self.pad_factor / (self.in_size - self.pad_factor) * float(D)
        self.block_batch = block_batch

        d2_f32 = jnp.asarray(np.asarray(_spectral_laplace_matrix(self.in_size, self.D),
                                        np.float32))
        # hi/lo bf16 split: keeps the MXU in bf16 while retaining ~f32 accuracy of D2.
        self._d2_hi = d2_f32.astype(jnp.bfloat16)
        self._d2_lo = (d2_f32 - self._d2_hi.astype(jnp.float32)).astype(jnp.bfloat16)
        self._fwd = jax.jit(self._forward)

    # ---- shared plumbing ----------------------------------------------------------
    def _grid_setup(self, batch):
        tb = self.block_batch or _choose_block_batch(batch, self.in_size)
        assert batch % tb == 0, "block_batch must divide the batch size"
        return tb, batch // tb

    @staticmethod
    def _compiler_params():
        # Blocks in flight are only a few MiB; 32 MiB leaves Mosaic scratch headroom
        # even on v7x (64 MiB physical VMEM per TensorCore).
        return pltpu.CompilerParams(dimension_semantics=("parallel",),
                                    vmem_limit_bytes=32 * 1024 * 1024)

    def _in_specs(self, tb, s):
        return [
            pl.BlockSpec((tb, s, s), lambda b: (b, 0, 0)),   # u (bf16)
            pl.BlockSpec((tb, s, s), lambda b: (b, 0, 0)),   # a (bf16)
            pl.BlockSpec((s, s), lambda b: (0, 0)),          # D2 hi (constant block)
            pl.BlockSpec((s, s), lambda b: (0, 0)),          # D2 lo (constant block)
        ]

    # ---- hot path: fused PDE loss ---------------------------------------------------
    def pde_loss(self, u, a):
        """mean_p over the crop of  Laplace(u) + omega^2 a^2 u, fully fused in-kernel."""
        s, orig = self.in_size, self.original
        batch = u.shape[0]
        assert u.shape == (batch, s, s) and a.shape == (batch, s, s)
        u_bf = u.astype(jnp.bfloat16)          # HBM-bound kernel: halve input bytes
        a_bf = a.astype(jnp.bfloat16)
        tb, steps = self._grid_setup(batch)

        kernel = _make_loss_kernel(tb, s, orig, self.omega ** 2, self.p)
        partial = pl.pallas_call(
            kernel,
            out_shape=jax.ShapeDtypeStruct((steps, 1, s), jnp.float32),
            grid_spec=pltpu.PrefetchScalarGridSpec(
                num_scalar_prefetch=0,
                grid=(steps,),
                in_specs=self._in_specs(tb, s),
                out_specs=pl.BlockSpec((1, 1, s), lambda b: (b, 0, 0)),
            ),
            compiler_params=self._compiler_params(),
        )(u_bf, a_bf, self._d2_hi, self._d2_lo)
        return jnp.sum(partial) / (batch * orig * orig)

    # ---- debug path: full residual field --------------------------------------------
    def pde_residual(self, u, a):
        """Fused  Laplace(u) + omega^2 a^2 u  over the full grid, (B, S, S) f32."""
        s = self.in_size
        batch = u.shape[0]
        u_bf = u.astype(jnp.bfloat16)
        a_bf = a.astype(jnp.bfloat16)
        tb, steps = self._grid_setup(batch)

        # TODO(synk): for very large grids (s >~ 1500) a full-S block overflows v7x's
        # 64 MiB VMEM; spatially tile the matmuls there (not needed at in_size=128).
        kernel = _make_residual_kernel(tb, s, self.omega ** 2)
        return pl.pallas_call(
            kernel,
            out_shape=jax.ShapeDtypeStruct((batch, s, s), jnp.float32),
            grid_spec=pltpu.PrefetchScalarGridSpec(
                num_scalar_prefetch=0,
                grid=(steps,),
                in_specs=self._in_specs(tb, s),
                out_specs=pl.BlockSpec((tb, s, s), lambda b: (b, 0, 0)),
            ),
            compiler_params=self._compiler_params(),
        )(u_bf, a_bf, self._d2_hi, self._d2_lo)

    # ---- full forward ----------------------------------------------------------------
    def _forward(self, inp, outp):
        s, orig, pad = self.in_size, self.original, self.pad_factor
        a = inp[:, 0].astype(jnp.float32)                     # coefficient field
        u = outp[:, 0].astype(jnp.float32)                    # output.squeeze(1)
        boundary = inp[:, 1, 0, 0].astype(jnp.float32)[:, None]

        loss_pde = self.pde_loss(u, a)                        # fused Pallas kernel

        # boundary terms: O(B*S) slicing + means -> plain JAX glue (negligible work)
        edge = s - 1 - pad
        boundary_loss = 0.25 * (
            jnp.mean(_pointwise_loss(u[:, 0, :orig] - boundary, self.p))
            + jnp.mean(_pointwise_loss(u[:, :orig, 0] - boundary, self.p))
            + jnp.mean(_pointwise_loss(u[:, edge, :orig] - boundary, self.p))
            + jnp.mean(_pointwise_loss(u[:, :orig, edge] - boundary, self.p)))
        return loss_pde, boundary_loss

    def __call__(self, inp, outp):
        return self._fwd(inp, outp)


# ----------------------------------------------------------------------------- reference
def _laplace_fft_reference(u, s, D):
    """jnp.fft mirror of the PyTorch Laplace module."""
    k_max = s // 2
    k = jnp.concatenate([jnp.arange(0, k_max + 1), jnp.arange(-k_max + 1, 0)]).astype(jnp.float32)
    sym = -4.0 * (np.pi / D) ** 2 * (k[:, None] ** 2 + k[None, :] ** 2)
    u_hat = jnp.fft.fft2(u.astype(jnp.float32), axes=(-2, -1))
    lap_hat = sym[None] * u_hat
    return jnp.fft.irfft2(lap_hat[..., :, : k_max + 1], s=(s, s), axes=(-2, -1))


def helmholtz_loss_reference(inp, outp, *, omega, p, D, pad_factor, in_size):
    """Pure-JAX mirror of the PyTorch Helmholtz_loss.forward."""
    s = in_size
    orig = s - pad_factor
    D_eff = D + pad_factor / (in_size - pad_factor) * D
    a = inp[:, 0].astype(jnp.float32)
    u = outp[:, 0].astype(jnp.float32)
    boundary = inp[:, 1, 0, 0].astype(jnp.float32)[:, None]

    lap = _laplace_fft_reference(u, s, D_eff)
    target = -(omega ** 2) * (a[..., :orig, :orig] ** 2) * u[..., :orig, :orig]
    loss_pde = jnp.mean(_pointwise_loss(lap[..., :orig, :orig] - target, p))

    edge = s - 1 - pad_factor
    boundary_loss = 0.25 * (
        jnp.mean(_pointwise_loss(u[:, 0, :orig] - boundary, p))
        + jnp.mean(_pointwise_loss(u[:, :orig, 0] - boundary, p))
        + jnp.mean(_pointwise_loss(u[:, edge, :orig] - boundary, p))
        + jnp.mean(_pointwise_loss(u[:, :orig, edge] - boundary, p)))
    return loss_pde, boundary_loss


# ----------------------------------------------------------------------------- main
if __name__ == "__main__":
    B, S = 2, 16
    OMEGA, P, D, PAD = 5.0 * np.pi / 2.0, 1, 1.0, 0

    key = jax.random.PRNGKey(0)
    k1, k2 = jax.random.split(key)
    inp = jax.random.normal(k1, (B, 2, S, S), dtype=jnp.float32)    # ch0: a, ch1: boundary field
    outp = jax.random.normal(k2, (B, 1, S, S), dtype=jnp.float32)   # network output u

    mod = HelmholtzLoss(omega=OMEGA, p=P, D=D, pad_factor=PAD, in_size=S)
    loss_pde, loss_bnd = jax.block_until_ready(mod(inp, outp))

    # Validate against a pure-JAX mirror of the PyTorch forward.
    ref_pde, ref_bnd = jax.block_until_ready(
        helmholtz_loss_reference(inp, outp, omega=OMEGA, p=P, D=D, pad_factor=PAD, in_size=S))

    err_pde = abs(float(loss_pde) - float(ref_pde)) / (abs(float(ref_pde)) + 1e-12)
    err_bnd = abs(float(loss_bnd) - float(ref_bnd)) / (abs(float(ref_bnd)) + 1e-12)
    assert err_pde < 1e-2, f"loss_pde mismatch: {float(loss_pde)} vs {float(ref_pde)} (rel {err_pde})"
    assert err_bnd < 1e-5, f"boundary_loss mismatch: {float(loss_bnd)} vs {float(ref_bnd)} (rel {err_bnd})"

    # Also validate the debug-path fused PDE-residual field.
    u_field, a_field = outp[:, 0], inp[:, 0]
    res_kernel = jax.block_until_ready(mod.pde_residual(u_field, a_field))
    res_ref = _laplace_fft_reference(u_field, S, mod.D) + (OMEGA ** 2) * (a_field ** 2) * u_field
    rel = float(jnp.linalg.norm(res_kernel - res_ref) / (jnp.linalg.norm(res_ref) + 1e-12))
    assert rel < 2e-2, f"residual field relative error too large: {rel}"

    print("KERNEL_OK")
</pallas_src>

<mosaic_0001>
module attributes {stable_mosaic.version = 11 : i64} {
  func.func @kernel(%arg0: i32, %arg1: memref<2x16x16xbf16, #tpu.memory_space<vmem>>, %arg2: memref<2x16x16xbf16, #tpu.memory_space<vmem>>, %arg3: memref<16x16xbf16, #tpu.memory_space<vmem>>, %arg4: memref<16x16xbf16, #tpu.memory_space<vmem>>, %arg5: memref<1x1x16xf32, #tpu.memory_space<vmem>>) attributes {dimension_semantics = [#tpu.dimension_semantics<parallel>], iteration_bounds = array<i64: 1>, scalar_prefetch = 0 : i64, scratch_operands = 0 : i64, tpu.core_type = #tpu.core_type<tc>, window_params = [{transform_indices = @transform_0, window_bounds = array<i64: 2, 16, 16>}, {transform_indices = @transform_1, window_bounds = array<i64: 2, 16, 16>}, {pipeline_mode = #tpu.pipeline_mode<synchronous>, transform_indices = @transform_2, window_bounds = array<i64: 16, 16>}, {pipeline_mode = #tpu.pipeline_mode<synchronous>, transform_indices = @transform_3, window_bounds = array<i64: 16, 16>}, {transform_indices = @transform_4, window_bounds = array<i64: 1, 1, 16>}]} {
    %c0 = arith.constant 0 : index
    %c0_0 = arith.constant 0 : index
    %0 = vector.load %arg3[%c0, %c0_0] : memref<16x16xbf16, #tpu.memory_space<vmem>>, vector<16x16xbf16>
    %c0_1 = arith.constant 0 : index
    %c0_2 = arith.constant 0 : index
    %1 = vector.load %arg4[%c0_1, %c0_2] : memref<16x16xbf16, #tpu.memory_space<vmem>>, vector<16x16xbf16>
    %cst = arith.constant 0.000000e+00 : f32
    %2 = vector.broadcast %cst : f32 to vector<16x16xf32>
    %c0_i32 = arith.constant 0 : i32
    %3 = arith.index_cast %c0_i32 : i32 to index
    %c0_3 = arith.constant 0 : index
    %c0_4 = arith.constant 0 : index
    %4 = vector.load %arg1[%3, %c0_3, %c0_4] : memref<2x16x16xbf16, #tpu.memory_space<vmem>>, vector<1x16x16xbf16>
    %5 = vector.shape_cast %4 : vector<1x16x16xbf16> to vector<16x16xbf16>
    %6 = arith.index_cast %c0_i32 : i32 to index
    %c0_5 = arith.constant 0 : index
    %c0_6 = arith.constant 0 : index
    %7 = vector.load %arg2[%6, %c0_5, %c0_6] : memref<2x16x16xbf16, #tpu.memory_space<vmem>>, vector<1x16x16xbf16>
    %8 = vector.shape_cast %7 : vector<1x16x16xbf16> to vector<16x16xbf16>
    %9 = arith.extf %8 : vector<16x16xbf16> to vector<16x16xf32>
    %cst_7 = arith.constant dense<0.000000e+00> : vector<16x16xf32>
    %10 = tpu.matmul %0, %5, %cst_7 {dimension_numbers = #tpu.dot_dimension_numbers<[1], [0], [0], [1], [0, 0, 1, 1], [], []>} : vector<16x16xbf16>, vector<16x16xbf16>, vector<16x16xf32> -> vector<16x16xf32>
    %cst_8 = arith.constant dense<0.000000e+00> : vector<16x16xf32>
    %11 = tpu.matmul %1, %5, %cst_8 {dimension_numbers = #tpu.dot_dimension_numbers<[1], [0], [0], [1], [0, 0, 1, 1], [], []>} : vector<16x16xbf16>, vector<16x16xbf16>, vector<16x16xf32> -> vector<16x16xf32>
    %12 = arith.addf %10, %11 : vector<16x16xf32>
    %cst_9 = arith.constant dense<0.000000e+00> : vector<16x16xf32>
    %13 = tpu.matmul %5, %0, %cst_9 {dimension_numbers = #tpu.dot_dimension_numbers<[1], [0], [0], [1], [0, 0, 1, 1], [], []>} : vector<16x16xbf16>, vector<16x16xbf16>, vector<16x16xf32> -> vector<16x16xf32>
    %14 = arith.addf %12, %13 : vector<16x16xf32>
    %cst_10 = arith.constant dense<0.000000e+00> : vector<16x16xf32>
    %15 = tpu.matmul %5, %1, %cst_10 {dimension_numbers = #tpu.dot_dimension_numbers<[1], [0], [0], [1], [0, 0, 1, 1], [], []>} : vector<16x16xbf16>, vector<16x16xbf16>, vector<16x16xf32> -> vector<16x16xf32>
    %16 = arith.addf %14, %15 : vector<16x16xf32>
    %17 = arith.extf %5 : vector<16x16xbf16> to vector<16x16xf32>
    %18 = arith.mulf %9, %9 : vector<16x16xf32>
    %cst_11 = arith.constant 61.6850281 : f32
    %19 = vector.broadcast %cst_11 : f32 to vector<16x16xf32>
    %20 = arith.mulf %19, %18 : vector<16x16xf32>
    %21 = arith.mulf %20, %17 : vector<16x16xf32>
    %22 = arith.addf %16, %21 : vector<16x16xf32>
    %23 = math.absf %22 : vector<16x16xf32>
    %24 = arith.addf %2, %23 : vector<16x16xf32>
    %c1_i32 = arith.constant 1 : i32
    %25 = arith.index_cast %c1_i32 : i32 to index
    %c0_12 = arith.constant 0 : index
    %c0_13 = arith.constant 0 : index
    %26 = vector.load %arg1[%25, %c0_12, %c0_13] : memref<2x16x16xbf16, #tpu.memory_space<vmem>>, vector<1x16x16xbf16>
    %27 = vector.shape_cast %26 : vector<1x16x16xbf16> to vector<16x16xbf16>
    %28 = arith.index_cast %c1_i32 : i32 to index
    %c0_14 = arith.constant 0 : index
    %c0_15 = arith.constant 0 : index
    %29 = vector.load %arg2[%28, %c0_14, %c0_15] : memref<2x16x16xbf16, #tpu.memory_space<vmem>>, vector<1x16x16xbf16>
    %30 = vector.shape_cast %29 : vector<1x16x16xbf16> to vector<16x16xbf16>
    %31 = arith.extf %30 : vector<16x16xbf16> to vector<16x16xf32>
    %cst_16 = arith.constant dense<0.000000e+00> : vector<16x16xf32>
    %32 = tpu.matmul %0, %27, %cst_16 {dimension_numbers = #tpu.dot_dimension_numbers<[1], [0], [0], [1], [0, 0, 1, 1], [], []>} : vector<16x16xbf16>, vector<16x16xbf16>, vector<16x16xf32> -> vector<16x16xf32>
    %cst_17 = arith.constant dense<0.000000e+00> : vector<16x16xf32>
    %33 = tpu.matmul %1, %27, %cst_17 {dimension_numbers = #tpu.dot_dimension_numbers<[1], [0], [0], [1], [0, 0, 1, 1], [], []>} : vector<16x16xbf16>, vector<16x16xbf16>, vector<16x16xf32> -> vector<16x16xf32>
    %34 = arith.addf %32, %33 : vector<16x16xf32>
    %cst_18 = arith.constant dense<0.000000e+00> : vector<16x16xf32>
    %35 = tpu.matmul %27, %0, %cst_18 {dimension_numbers = #tpu.dot_dimension_numbers<[1], [0], [0], [1], [0, 0, 1, 1], [], []>} : vector<16x16xbf16>, vector<16x16xbf16>, vector<16x16xf32> -> vector<16x16xf32>
    %36 = arith.addf %34, %35 : vector<16x16xf32>
    %cst_19 = arith.constant dense<0.000000e+00> : vector<16x16xf32>
    %37 = tpu.matmul %27, %1, %cst_19 {dimension_numbers = #tpu.dot_dimension_numbers<[1], [0], [0], [1], [0, 0, 1, 1], [], []>} : vector<16x16xbf16>, vector<16x16xbf16>, vector<16x16xf32> -> vector<16x16xf32>
    %38 = arith.addf %36, %37 : vector<16x16xf32>
    %39 = arith.extf %27 : vector<16x16xbf16> to vector<16x16xf32>
    %40 = arith.mulf %31, %31 : vector<16x16xf32>
    %cst_20 = arith.constant 61.6850281 : f32
    %41 = vector.broadcast %cst_20 : f32 to vector<16x16xf32>
    %42 = arith.mulf %41, %40 : vector<16x16xf32>
    %43 = arith.mulf %42, %39 : vector<16x16xf32>
    %44 = arith.addf %38, %43 : vector<16x16xf32>
    %45 = math.absf %44 : vector<16x16xf32>
    %46 = arith.addf %24, %45 : vector<16x16xf32>
    %c2_i32 = arith.constant 2 : i32
    %cst_21 = arith.constant dense<0.000000e+00> : vector<16xf32>
    %47 = vector.multi_reduction <add>, %46, %cst_21 [0] : vector<16x16xf32> to vector<16xf32>
    %48 = vector.shape_cast %47 : vector<16xf32> to vector<1x16xf32>
    %49 = vector.shape_cast %48 : vector<1x16xf32> to vector<1x1x16xf32>
    %c0_22 = arith.constant 0 : index
    %c0_23 = arith.constant 0 : index
    %c0_24 = arith.constant 0 : index
    %50 = vector.load %arg5[%c0_22, %c0_23, %c0_24] : memref<1x1x16xf32, #tpu.memory_space<vmem>>, vector<1x1x16xf32>
    tpu.vector_store %arg5[%c0_22, %c0_23, %c0_24], %49 {strides = array<i32>} : memref<1x1x16xf32, #tpu.memory_space<vmem>>, vector<1x1x16xf32>,
    return
  }
  func.func @transform_0(%arg0: i32) -> (i32, i32, i32) {
    %c0_i32 = arith.constant 0 : i32
    %c0_i32_0 = arith.constant 0 : i32
    %c0_i32_1 = arith.constant 0 : i32
    return %arg0, %c0_i32, %c0_i32_0 : i32, i32, i32
  }
  func.func @transform_1(%arg0: i32) -> (i32, i32, i32) {
    %c0_i32 = arith.constant 0 : i32
    %c0_i32_0 = arith.constant 0 : i32
    %c0_i32_1 = arith.constant 0 : i32
    return %arg0, %c0_i32, %c0_i32_0 : i32, i32, i32
  }
  func.func @transform_2(%arg0: i32) -> (i32, i32) {
    %c0_i32 = arith.constant 0 : i32
    %c0_i32_0 = arith.constant 0 : i32
    %c0_i32_1 = arith.constant 0 : i32
    return %c0_i32, %c0_i32_0 : i32, i32
  }
  func.func @transform_3(%arg0: i32) -> (i32, i32) {
    %c0_i32 = arith.constant 0 : i32
    %c0_i32_0 = arith.constant 0 : i32
    %c0_i32_1 = arith.constant 0 : i32
    return %c0_i32, %c0_i32_0 : i32, i32
  }
  func.func @transform_4(%arg0: i32) -> (i32, i32, i32) {
    %c0_i32 = arith.constant 0 : i32
    %c0_i32_0 = arith.constant 0 : i32
    %c0_i32_1 = arith.constant 0 : i32
    return %arg0, %c0_i32, %c0_i32_0 : i32, i32, i32
  }
}

</mosaic_0001>

<llo_original>
// kernel: _forward.1
$region0: #{_forward.1}
  #allocation0 [shape = 'u32[]', space=smem, size = 0x4, offset = 0x4, fixed_abs, tag = 'smem constant byte address 0x4 - core index']
  #allocation1 [shape = 'u32[144,128]{1,0:T(1,128)}', space=vmem, size = 0x12000, scoped, tag = 'internal scratch']
  %s0 = inlined_call_operand.vmem [shape: bf16[2,16,16], index: 0, kind: input, shape index: {}]
  %s1 = inlined_call_operand.vmem [shape: bf16[2,16,16], index: 1, kind: input, shape index: {}]
  %s2 = inlined_call_operand.vmem [shape: bf16[16,16], index: 2, kind: input, shape index: {}]
  %s3 = inlined_call_operand.vmem [shape: bf16[16,16], index: 3, kind: input, shape index: {}]
  %s4 = inlined_call_operand.vmem [shape: f32[1,1,16], index: 4, kind: output, shape index: {}]
  %s5 = sld [smem:[#allocation0]]
  $region26: #{_forward.1} parent=0
    _
  %s7 = ssub.s32 1, %s5
  %s8 = scalar_select 0, %s7, %s5
  // Predicated region
  $region2: #{_forward.1} parent=0 // pred_check
    _
  $region3: #{_forward.1} parent=0 // pred_check_branch
    %10 = sbr.rel (0) target = $region5
  $region4: #{_forward.1} parent=0 // pred_region
    _
  $region5: #{_forward.1} parent=0 // pred_fallthru
    _
  // Predicated region
  $region6: #{_forward.1} parent=0 // pred_check
    _
  $region7: #{_forward.1} parent=0 // pred_check_branch
    %12 = sbr.rel (0) target = $region9
  $region8: #{_forward.1} parent=0 // pred_region
    _
  $region9: #{_forward.1} parent=0 // pred_fallthru
    _
  // Predicated region
  $region10: #{_forward.1} parent=0 // pred_check
    _
  $region11: #{_forward.1} parent=0 // pred_check_branch
    %14 = sbr.rel (0) target = $region13
  $region12: #{_forward.1} parent=0 // pred_region
    _
  $region13: #{_forward.1} parent=0 // pred_fallthru
    _
  // Predicated region
  $region14: #{_forward.1} parent=0 // pred_check
    _
  $region15: #{_forward.1} parent=0 // pred_check_branch
    %16 = sbr.rel (0) target = $region17
  $region16: #{_forward.1} parent=0 // pred_region
    _
  $region17: #{_forward.1} parent=0 // pred_fallthru
    _
  %v18 = vld [vmem:[%s2] sm:$0xf]
  %v19 = vld [vmem:[%s2 + $0x4] sm:$0xf]
  %v20 = vld [vmem:[%s3] sm:$0xf]
  %v21 = vld [vmem:[%s3 + $0x4] sm:$0xf]
  %v22 = vld [vmem:[%s0] sm:$0xf]
  %v23 = vld [vmem:[%s0 + $0x4] sm:$0xf]
  %v24 = vld [vmem:[%s1] sm:$0xf]
  %v25 = vld [vmem:[%s1 + $0x4] sm:$0xf]
  %v26 = vunpack.c.l.bf16 %v24
  %v27 = vunpack.c.l.bf16 %v25
  %v30 = vunpack.c.l.b16 %v20
  %v31 = vunpack.c.l.b16 %v21
  %v32 = vpack.c.b16 %v31, %v30
  %v35 = vunpack.c.l.b16 %v22
  %v36 = vunpack.c.l.b16 %v23
  %v37 = vpack.c.b16 %v36, %v35
  %vm39 = vcmask 130048
  %v41 = vsel %vm39, %v32, 0
  %43 = vmatprep.subr.bf16.mxu0 0
  %44 = vmatpush1.bf16.msra.mxu0 %v37
  %45 = vmatprep.subr.bf16.mxu0 0
  %46 = vmatpush1.bf16.msra.mxu0 0
  %47 = vmatprep.subr.bf16.mxu0 0
  %48 = vmatpush1.bf16.msra.mxu0 0
  %49 = vmatprep.subr.bf16.mxu0 0
  %50 = vmatpush1.bf16.msra.mxu0 0
  %51 = vmatprep.subr.bf16.mxu0 0
  %52 = vmatpush1.bf16.msra.mxu0 0
  %53 = vmatprep.subr.bf16.mxu0 0
  %54 = vmatpush1.bf16.msra.mxu0 0
  %55 = vmatprep.subr.bf16.mxu0 0
  %56 = vmatpush1.bf16.msra.mxu0 0
  %57 = vmatprep.subr.bf16.mxu0 0
  %58 = vmatpush1.bf16.msra.mxu0 0
  %59 = vmatprep.subr.bf16.mxu0 0
  %60 = vmatpush1.bf16.msra.mxu0 0
  %61 = vmatprep.subr.bf16.mxu0 0
  %62 = vmatpush1.bf16.msra.mxu0 0
  %63 = vmatprep.subr.bf16.mxu0 0
  %64 = vmatpush1.bf16.msra.mxu0 0
  %65 = vmatprep.subr.bf16.mxu0 0
  %66 = vmatpush1.bf16.msra.mxu0 0
  %67 = vmatprep.subr.bf16.mxu0 0
  %68 = vmatpush1.bf16.msra.mxu0 0
  %69 = vmatprep.subr.bf16.mxu0 0
  %70 = vmatpush1.bf16.msra.mxu0 0
  %71 = vmatprep.subr.bf16.mxu0 0
  %72 = vmatpush1.bf16.msra.mxu0 0
  %73 = vmatprep.subr.bf16.mxu0 0
  %74 = vmatpush1.bf16.msra.mxu0 0
  %75 = vmatprep.mubr.bf16.mxu0 0
  %76 = vmatmul.mubr.bf16.gmra.mrb[0].mxu0 %v41
  %v77 = vpop.f32.mrb[0].mxu0
  %v78 = vadd.f32 0.0, %v77
  %v79 = vpop.f32.mrb[0].mxu0
  %v80 = vpop.f32.mrb[0].mxu0
  %v81 = vadd.f32 0.0, %v80
  %v82 = vpop.f32.mrb[0].mxu0
  %83 = vdwg.mxu0
  %v86 = vunpack.c.l.b16 %v18
  %v87 = vunpack.c.l.b16 %v19
  %v88 = vpack.c.b16 %v87, %v86
  %v90 = vsel %vm39, %v88, 0
  %92 = vmatprep.subr.bf16.mxu0 0
  %93 = vmatpush1.bf16.msra.mxu0 %v37
  %94 = vmatprep.subr.bf16.mxu0 0
  %95 = vmatpush1.bf16.msra.mxu0 0
  %96 = vmatprep.subr.bf16.mxu0 0
  %97 = vmatpush1.bf16.msra.mxu0 0
  %98 = vmatprep.subr.bf16.mxu0 0
  %99 = vmatpush1.bf16.msra.mxu0 0
  %100 = vmatprep.subr.bf16.mxu0 0
  %101 = vmatpush1.bf16.msra.mxu0 0
  %102 = vmatprep.subr.bf16.mxu0 0
  %103 = vmatpush1.bf16.msra.mxu0 0
  %104 = vmatprep.subr.bf16.mxu0 0
  %105 = vmatpush1.bf16.msra.mxu0 0
  %106 = vmatprep.subr.bf16.mxu0 0
  %107 = vmatpush1.bf16.msra.mxu0 0
  %108 = vmatprep.subr.bf16.mxu0 0
  %109 = vmatpush1.bf16.msra.mxu0 0
  %110 = vmatprep.subr.bf16.mxu0 0
  %111 = vmatpush1.bf16.msra.mxu0 0
  %112 = vmatprep.subr.bf16.mxu0 0
  %113 = vmatpush1.bf16.msra.mxu0 0
  %114 = vmatprep.subr.bf16.mxu0 0
  %115 = vmatpush1.bf16.msra.mxu0 0
  %116 = vmatprep.subr.bf16.mxu0 0
  %117 = vmatpush1.bf16.msra.mxu0 0
  %118 = vmatprep.subr.bf16.mxu0 0
  %119 = vmatpush1.bf16.msra.mxu0 0
  %120 = vmatprep.subr.bf16.mxu0 0
  %121 = vmatpush1.bf16.msra.mxu0 0
  %122 = vmatprep.subr.bf16.mxu0 0
  %123 = vmatpush1.bf16.msra.mxu0 0
  %124 = vmatprep.mubr.bf16.mxu0 0
  %125 = vmatmul.mubr.bf16.gmra.mrb[0].mxu0 %v90
  %v126 = vpop.f32.mrb[0].mxu0
  %v127 = vadd.f32 %v78, %v126
  %v128 = vpop.f32.mrb[0].mxu0
  %v129 = vpop.f32.mrb[0].mxu0
  %v130 = vadd.f32 %v81, %v129
  %v131 = vpop.f32.mrb[0].mxu0
  %132 = vdwg.mxu0
  %v135 = vsel %vm39, %v37, 0
  %137 = vmatprep.subr.bf16.mxu0 0
  %138 = vmatpush1.bf16.msra.mxu0 %v88
  %139 = vmatprep.subr.bf16.mxu0 0
  %140 = vmatpush1.bf16.msra.mxu0 0
  %141 = vmatprep.subr.bf16.mxu0 0
  %142 = vmatpush1.bf16.msra.mxu0 0
  %143 = vmatprep.subr.bf16.mxu0 0
  %144 = vmatpush1.bf16.msra.mxu0 0
  %145 = vmatprep.subr.bf16.mxu0 0
  %146 = vmatpush1.bf16.msra.mxu0 0
  %147 = vmatprep.subr.bf16.mxu0 0
  %148 = vmatpush1.bf16.msra.mxu0 0
  %149 = vmatprep.subr.bf16.mxu0 0
  %150 = vmatpush1.bf16.msra.mxu0 0
  %151 = vmatprep.subr.bf16.mxu0 0
  %152 = vmatpush1.bf16.msra.mxu0 0
  %153 = vmatprep.subr.bf16.mxu0 0
  %154 = vmatpush1.bf16.msra.mxu0 0
  %155 = vmatprep.subr.bf16.mxu0 0
  %156 = vmatpush1.bf16.msra.mxu0 0
  %157 = vmatprep.subr.bf16.mxu0 0
  %158 = vmatpush1.bf16.msra.mxu0 0
  %159 = vmatprep.subr.bf16.mxu0 0
  %160 = vmatpush1.bf16.msra.mxu0 0
  %161 = vmatprep.subr.bf16.mxu0 0
  %162 = vmatpush1.bf16.msra.mxu0 0
  %163 = vmatprep.subr.bf16.mxu0 0
  %164 = vmatpush1.bf16.msra.mxu0 0
  %165 = vmatprep.subr.bf16.mxu0 0
  %166 = vmatpush1.bf16.msra.mxu0 0
  %167 = vmatprep.subr.bf16.mxu0 0
  %168 = vmatpush1.bf16.msra.mxu0 0
  %169 = vmatprep.mubr.bf16.mxu0 0
  %170 = vmatmul.mubr.bf16.gmra.mrb[0].mxu0 %v135
  %v171 = vpop.f32.mrb[0].mxu0
  %v172 = vadd.f32 0.0, %v171
  %v173 = vpop.f32.mrb[0].mxu0
  %v174 = vpop.f32.mrb[0].mxu0
  %v175 = vadd.f32 0.0, %v174
  %v176 = vpop.f32.mrb[0].mxu0
  %177 = vdwg.mxu0
  %v178 = vadd.f32 %v127, %v172
  %v179 = vadd.f32 %v130, %v175
  %181 = vmatprep.subr.bf16.mxu0 0
  %182 = vmatpush1.bf16.msra.mxu0 %v32
  %183 = vmatprep.subr.bf16.mxu0 0
  %184 = vmatpush1.bf16.msra.mxu0 0
  %185 = vmatprep.subr.bf16.mxu0 0
  %186 = vmatpush1.bf16.msra.mxu0 0
  %187 = vmatprep.subr.bf16.mxu0 0
  %188 = vmatpush1.bf16.msra.mxu0 0
  %189 = vmatprep.subr.bf16.mxu0 0
  %190 = vmatpush1.bf16.msra.mxu0 0
  %191 = vmatprep.subr.bf16.mxu0 0
  %192 = vmatpush1.bf16.msra.mxu0 0
  %193 = vmatprep.subr.bf16.mxu0 0
  %194 = vmatpush1.bf16.msra.mxu0 0
  %195 = vmatprep.subr.bf16.mxu0 0
  %196 = vmatpush1.bf16.msra.mxu0 0
  %197 = vmatprep.subr.bf16.mxu0 0
  %198 = vmatpush1.bf16.msra.mxu0 0
  %199 = vmatprep.subr.bf16.mxu0 0
  %200 = vmatpush1.bf16.msra.mxu0 0
  %201 = vmatprep.subr.bf16.mxu0 0
  %202 = vmatpush1.bf16.msra.mxu0 0
  %203 = vmatprep.subr.bf16.mxu0 0
  %204 = vmatpush1.bf16.msra.mxu0 0
  %205 = vmatprep.subr.bf16.mxu0 0
  %206 = vmatpush1.bf16.msra.mxu0 0
  %207 = vmatprep.subr.bf16.mxu0 0
  %208 = vmatpush1.bf16.msra.mxu0 0
  %209 = vmatprep.subr.bf16.mxu0 0
  %210 = vmatpush1.bf16.msra.mxu0 0
  %211 = vmatprep.subr.bf16.mxu0 0
  %212 = vmatpush1.bf16.msra.mxu0 0
  %213 = vmatprep.mubr.bf16.mxu0 0
  %214 = vmatmul.mubr.bf16.gmra.mrb[0].mxu0 %v135
  %v215 = vpop.f32.mrb[0].mxu0
  %v216 = vadd.f32 0.0, %v215
  %v217 = vpop.f32.mrb[0].mxu0
  %v218 = vpop.f32.mrb[0].mxu0
  %v219 = vadd.f32 0.0, %v218
  %v220 = vpop.f32.mrb[0].mxu0
  %221 = vdwg.mxu0
  %v222 = vadd.f32 %v178, %v216
  %v223 = vadd.f32 %v179, %v219
  %v224 = vunpack.c.l.bf16 %v22
  %v225 = vunpack.c.l.bf16 %v23
  %v226 = vmul.f32 %v26, %v26
  %v227 = vmul.f32 %v27, %v27
  %v228 = vmul.f32 %v226, 61.685028
  %v229 = vmul.f32 %v227, 61.685028
  %v230 = vmul.f32 %v228, %v224
  %v231 = vmul.f32 %v229, %v225
  %v232 = vadd.f32 %v222, %v230
  %v233 = vadd.f32 %v223, %v231
  %v234 = vand.u32 2147483647, %v232
  %v235 = vand.u32 2147483647, %v233
  %v236 = vadd.f32 %v234, 0.0
  %v237 = vadd.f32 %v235, 0.0
  %s238 = scalar_lea.vmem %s0, 8
  %v239 = vld [vmem:[%s238] sm:$0xf]
  %v240 = vld [vmem:[%s238 + $0x4] sm:$0xf]
  %s241 = scalar_lea.vmem %s1, 8
  %v242 = vld [vmem:[%s241] sm:$0xf]
  %v243 = vld [vmem:[%s241 + $0x4] sm:$0xf]
  %v244 = vunpack.c.l.bf16 %v242
  %v245 = vunpack.c.l.bf16 %v243
  %v248 = vunpack.c.l.b16 %v239
  %v249 = vunpack.c.l.b16 %v240
  %v250 = vpack.c.b16 %v249, %v248
  %252 = vmatprep.subr.bf16.mxu0 0
  %253 = vmatpush1.bf16.msra.mxu0 %v250
  %254 = vmatprep.subr.bf16.mxu0 0
  %255 = vmatpush1.bf16.msra.mxu0 0
  %256 = vmatprep.subr.bf16.mxu0 0
  %257 = vmatpush1.bf16.msra.mxu0 0
  %258 = vmatprep.subr.bf16.mxu0 0
  %259 = vmatpush1.bf16.msra.mxu0 0
  %260 = vmatprep.subr.bf16.mxu0 0
  %261 = vmatpush1.bf16.msra.mxu0 0
  %262 = vmatprep.subr.bf16.mxu0 0
  %263 = vmatpush1.bf16.msra.mxu0 0
  %264 = vmatprep.subr.bf16.mxu0 0
  %265 = vmatpush1.bf16.msra.mxu0 0
  %266 = vmatprep.subr.bf16.mxu0 0
  %267 = vmatpush1.bf16.msra.mxu0 0
  %268 = vmatprep.subr.bf16.mxu0 0
  %269 = vmatpush1.bf16.msra.mxu0 0
  %270 = vmatprep.subr.bf16.mxu0 0
  %271 = vmatpush1.bf16.msra.mxu0 0
  %272 = vmatprep.subr.bf16.mxu0 0
  %273 = vmatpush1.bf16.msra.mxu0 0
  %274 = vmatprep.subr.bf16.mxu0 0
  %275 = vmatpush1.bf16.msra.mxu0 0
  %276 = vmatprep.subr.bf16.mxu0 0
  %277 = vmatpush1.bf16.msra.mxu0 0
  %278 = vmatprep.subr.bf16.mxu0 0
  %279 = vmatpush1.bf16.msra.mxu0 0
  %280 = vmatprep.subr.bf16.mxu0 0
  %281 = vmatpush1.bf16.msra.mxu0 0
  %282 = vmatprep.subr.bf16.mxu0 0
  %283 = vmatpush1.bf16.msra.mxu0 0
  %284 = vmatprep.mubr.bf16.mxu0 0
  %285 = vmatmul.mubr.bf16.gmra.mrb[0].mxu0 %v41
  %v286 = vpop.f32.mrb[0].mxu0
  %v287 = vadd.f32 0.0, %v286
  %v288 = vpop.f32.mrb[0].mxu0
  %v289 = vpop.f32.mrb[0].mxu0
  %v290 = vadd.f32 0.0, %v289
  %v291 = vpop.f32.mrb[0].mxu0
  %292 = vdwg.mxu0
  %293 = vmatprep.subr.bf16.mxu0 0
  %294 = vmatpush1.bf16.msra.mxu0 %v250
  %295 = vmatprep.subr.bf16.mxu0 0
  %296 = vmatpush1.bf16.msra.mxu0 0
  %297 = vmatprep.subr.bf16.mxu0 0
  %298 = vmatpush1.bf16.msra.mxu0 0
  %299 = vmatprep.subr.bf16.mxu0 0
  %300 = vmatpush1.bf16.msra.mxu0 0
  %301 = vmatprep.subr.bf16.mxu0 0
  %302 = vmatpush1.bf16.msra.mxu0 0
  %303 = vmatprep.subr.bf16.mxu0 0
  %304 = vmatpush1.bf16.msra.mxu0 0
  %305 = vmatprep.subr.bf16.mxu0 0
  %306 = vmatpush1.bf16.msra.mxu0 0
  %307 = vmatprep.subr.bf16.mxu0 0
  %308 = vmatpush1.bf16.msra.mxu0 0
  %309 = vmatprep.subr.bf16.mxu0 0
  %310 = vmatpush1.bf16.msra.mxu0 0
  %311 = vmatprep.subr.bf16.mxu0 0
  %312 = vmatpush1.bf16.msra.mxu0 0
  %313 = vmatprep.subr.bf16.mxu0 0
  %314 = vmatpush1.bf16.msra.mxu0 0
  %315 = vmatprep.subr.bf16.mxu0 0
  %316 = vmatpush1.bf16.msra.mxu0 0
  %317 = vmatprep.subr.bf16.mxu0 0
  %318 = vmatpush1.bf16.msra.mxu0 0
  %319 = vmatprep.subr.bf16.mxu0 0
  %320 = vmatpush1.bf16.msra.mxu0 0
  %321 = vmatprep.subr.bf16.mxu0 0
  %322 = vmatpush1.bf16.msra.mxu0 0
  %323 = vmatprep.subr.bf16.mxu0 0
  %324 = vmatpush1.bf16.msra.mxu0 0
  %325 = vmatprep.mubr.bf16.mxu0 0
  %326 = vmatmul.mubr.bf16.gmra.mrb[0].mxu0 %v90
  %v327 = vpop.f32.mrb[0].mxu0
  %v328 = vadd.f32 %v287, %v327
  %v329 = vpop.f32.mrb[0].mxu0
  %v330 = vpop.f32.mrb[0].mxu0
  %v331 = vadd.f32 %v290, %v330
  %v332 = vpop.f32.mrb[0].mxu0
  %333 = vdwg.mxu0
  %v335 = vsel %vm39, %v250, 0
  %337 = vmatprep.subr.bf16.mxu0 0
  %338 = vmatpush1.bf16.msra.mxu0 %v88
  %339 = vmatprep.subr.bf16.mxu0 0
  %340 = vmatpush1.bf16.msra.mxu0 0
  %341 = vmatprep.subr.bf16.mxu0 0
  %342 = vmatpush1.bf16.msra.mxu0 0
  %343 = vmatprep.subr.bf16.mxu0 0
  %344 = vmatpush1.bf16.msra.mxu0 0
  %345 = vmatprep.subr.bf16.mxu0 0
  %346 = vmatpush1.bf16.msra.mxu0 0
  %347 = vmatprep.subr.bf16.mxu0 0
  %348 = vmatpush1.bf16.msra.mxu0 0
  %349 = vmatprep.subr.bf16.mxu0 0
  %350 = vmatpush1.bf16.msra.mxu0 0
  %351 = vmatprep.subr.bf16.mxu0 0
  %352 = vmatpush1.bf16.msra.mxu0 0
  %353 = vmatprep.subr.bf16.mxu0 0
  %354 = vmatpush1.bf16.msra.mxu0 0
  %355 = vmatprep.subr.bf16.mxu0 0
  %356 = vmatpush1.bf16.msra.mxu0 0
  %357 = vmatprep.subr.bf16.mxu0 0
  %358 = vmatpush1.bf16.msra.mxu0 0
  %359 = vmatprep.subr.bf16.mxu0 0
  %360 = vmatpush1.bf16.msra.mxu0 0
  %361 = vmatprep.subr.bf16.mxu0 0
  %362 = vmatpush1.bf16.msra.mxu0 0
  %363 = vmatprep.subr.bf16.mxu0 0
  %364 = vmatpush1.bf16.msra.mxu0 0
  %365 = vmatprep.subr.bf16.mxu0 0
  %366 = vmatpush1.bf16.msra.mxu0 0
  %367 = vmatprep.subr.bf16.mxu0 0
  %368 = vmatpush1.bf16.msra.mxu0 0
  %369 = vmatprep.mubr.bf16.mxu0 0
  %370 = vmatmul.mubr.bf16.gmra.mrb[0].mxu0 %v335
  %v371 = vpop.f32.mrb[0].mxu0
  %v372 = vadd.f32 0.0, %v371
  %v373 = vpop.f32.mrb[0].mxu0
  %v374 = vpop.f32.mrb[0].mxu0
  %v375 = vadd.f32 0.0, %v374
  %v376 = vpop.f32.mrb[0].mxu0
  %377 = vdwg.mxu0
  %v378 = vadd.f32 %v328, %v372
  %v379 = vadd.f32 %v331, %v375
  %380 = vmatprep.subr.bf16.mxu0 0
  %381 = vmatpush1.bf16.msra.mxu0 %v32
  %382 = vmatprep.subr.bf16.mxu0 0
  %383 = vmatpush1.bf16.msra.mxu0 0
  %384 = vmatprep.subr.bf16.mxu0 0
  %385 = vmatpush1.bf16.msra.mxu0 0
  %386 = vmatprep.subr.bf16.mxu0 0
  %387 = vmatpush1.bf16.msra.mxu0 0
  %388 = vmatprep.subr.bf16.mxu0 0
  %389 = vmatpush1.bf16.msra.mxu0 0
  %390 = vmatprep.subr.bf16.mxu0 0
  %391 = vmatpush1.bf16.msra.mxu0 0
  %392 = vmatprep.subr.bf16.mxu0 0
  %393 = vmatpush1.bf16.msra.mxu0 0
  %394 = vmatprep.subr.bf16.mxu0 0
  %395 = vmatpush1.bf16.msra.mxu0 0
  %396 = vmatprep.subr.bf16.mxu0 0
  %397 = vmatpush1.bf16.msra.mxu0 0
  %398 = vmatprep.subr.bf16.mxu0 0
  %399 = vmatpush1.bf16.msra.mxu0 0
  %400 = vmatprep.subr.bf16.mxu0 0
  %401 = vmatpush1.bf16.msra.mxu0 0
  %402 = vmatprep.subr.bf16.mxu0 0
  %403 = vmatpush1.bf16.msra.mxu0 0
  %404 = vmatprep.subr.bf16.mxu0 0
  %405 = vmatpush1.bf16.msra.mxu0 0
  %406 = vmatprep.subr.bf16.mxu0 0
  %407 = vmatpush1.bf16.msra.mxu0 0
  %408 = vmatprep.subr.bf16.mxu0 0
  %409 = vmatpush1.bf16.msra.mxu0 0
  %410 = vmatprep.subr.bf16.mxu0 0
  %411 = vmatpush1.bf16.msra.mxu0 0
  %412 = vmatprep.mubr.bf16.mxu0 0
  %413 = vmatmul.mubr.bf16.gmra.mrb[0].mxu0 %v335
  %v414 = vpop.f32.mrb[0].mxu0
  %v415 = vadd.f32 0.0, %v414
  %v416 = vpop.f32.mrb[0].mxu0
  %v417 = vpop.f32.mrb[0].mxu0
  %v418 = vadd.f32 0.0, %v417
  %v419 = vpop.f32.mrb[0].mxu0
  %420 = vdwg.mxu0
  %v421 = vadd.f32 %v378, %v415
  %v422 = vadd.f32 %v379, %v418
  %v423 = vunpack.c.l.bf16 %v239
  %v424 = vunpack.c.l.bf16 %v240
  %v425 = vmul.f32 %v244, %v244
  %v426 = vmul.f32 %v245, %v245
  %v427 = vmul.f32 %v425, 61.685028
  %v428 = vmul.f32 %v426, 61.685028
  %v429 = vmul.f32 %v427, %v423
  %v430 = vmul.f32 %v428, %v424
  %v431 = vadd.f32 %v421, %v429
  %v432 = vadd.f32 %v422, %v430
  %v433 = vand.u32 2147483647, %v431
  %v434 = vand.u32 2147483647, %v432
  %v435 = vadd.f32 %v236, %v433
  %v436 = vadd.f32 %v237, %v434
  %v437 = vsel %vm39, %v435, 0.0
  %v438 = vsel %vm39, %v436, 0.0
  %v439 = vadd.f32 %v437, %v438
  %v440 = vrot.slane %v439, 4
  %v441 = vadd.f32 %v439, %v440
  %v442 = vrot.slane %v441, 2
  %v443 = vadd.f32 %v441, %v442
  %v444 = vrot.slane %v443, 1
  %v445 = vadd.f32 %v443, %v444
  %vm446 = vcmask 122880
  %447 = vst.msk [vmem:[%s4] sm:$0x1] %vm446, %v445
  // Predicated region
  $region18: #{_forward.1} parent=0 // pred_check
    _
  $region19: #{_forward.1} parent=0 // pred_check_branch
    %449 = sbr.rel (0) target = $region21
  $region20: #{_forward.1} parent=0 // pred_region
    _
  $region21: #{_forward.1} parent=0 // pred_fallthru
    _
  // Predicated region
  $region22: #{_forward.1} parent=0 // pred_check
    _
  $region23: #{_forward.1} parent=0 // pred_check_branch
    %451 = sbr.rel (0) target = $region25
  $region24: #{_forward.1} parent=0 // pred_region
    _
  $region25: #{_forward.1} parent=0 // pred_fallthru
    _

</llo_original>
